<compile_context>
chip_gen: v5e
topology: v5e:2x2
jax: 0.10.0
libtpu: 0.0.40
codegen_flags: <defaults>
</compile_context>

<pallas_src>
import numpy as np
import jax
import jax.numpy as jnp
from jax.experimental import pallas as pl
from jax.experimental.pallas import tpu as pltpu


def _contiguous_runs(keep):
    """[start, stop) runs of consecutive indices in the (sorted) keep vector."""
    runs = []
    start = prev = int(keep[0])
    for i in keep[1:]:
        i = int(i)
        if i == prev + 1:
            prev = i
        else:
            runs.append((start, prev + 1))
            start = prev = i
    runs.append((start, prev + 1))
    return tuple(runs)


def _make_mask_gather_kernel(runs):
    """Kernel: copy the kept column runs of x into a packed output tile."""
    def kernel(x_ref, o_ref):
        x = x_ref[...]                      # (tm, D) tile: one dense load
        off = 0
        for a, b in runs:                   # static Python loop -> static slices
            w = b - a
            o_ref[:, off:off + w] = x[:, a:b]
            off += w
    return kernel


def _choose_tm(M, D, K, itemsize):
    """Pick a large, VMEM-safe row tile (multiple of the sublane packing)."""
    per_row_bytes = (D + K) * itemsize
    align = 8 * max(1, 4 // itemsize)       # 8 rows f32, 16 bf16, 32 int8
    budget = 8 << 20                        # bytes per grid step (in + out tile);
                                            # 2x double-buffer stays << 32 MiB scoped VMEM
    tm = min(2048, budget // max(per_row_bytes, 1))
    tm = max(align, (tm // align) * align)
    if tm >= M:
        return M                            # single block == full array dims (always legal)
    return tm


def mask_indices_forward(x, indices, *, tm=None):
    """Pallas equivalent of MaskIndices.forward: returns x[..., ~indices].

    `indices` is a static (host-side) boolean mask over the last dim of x.
    """
    indices = np.asarray(indices, dtype=bool)
    D = x.shape[-1]
    assert indices.shape == (D,)

    keep = np.where(~indices)[0]            # static kept-column indices
    K = int(keep.shape[0])
    lead = x.shape[:-1]
    M = int(np.prod(lead)) if lead else 1

    if K == 0 or M == 0:                    # degenerate: nothing to gather
        return jnp.zeros((*lead, K), dtype=x.dtype)

    runs = _contiguous_runs(keep)
    itemsize = jnp.dtype(x.dtype).itemsize
    if tm is None:
        tm = _choose_tm(M, D, K, itemsize)
    tm = min(tm, M)
    grid = (pl.cdiv(M, tm),)                # partial last block handled by Pallas masking

    x2 = x.reshape(M, D)

    out2 = pl.pallas_call(
        _make_mask_gather_kernel(runs),
        out_shape=jax.ShapeDtypeStruct((M, K), x.dtype),
        grid_spec=pltpu.PrefetchScalarGridSpec(
            num_scalar_prefetch=0,
            grid=grid,
            in_specs=[pl.BlockSpec((tm, D), lambda i: (i, 0))],
            out_specs=pl.BlockSpec((tm, K), lambda i: (i, 0)),
        ),
        compiler_params=pltpu.CompilerParams(
            dimension_semantics=("parallel",),   # row axis shardable across TCs (v7x)
        ),
        cost_estimate=pl.CostEstimate(           # memory-bound hint for XLA scheduling
            flops=0,
            transcendentals=0,
            bytes_accessed=int(M * (D + K) * itemsize),
        ),
    )(x2)

    return out2.reshape(*lead, K)


if __name__ == "__main__":
    # Deterministic "parameter": boolean mask over the last dim (D = 16).
    D = 16
    indices = (np.arange(D) % 3 == 0)       # True at 0,3,6,9,12,15 -> keeps K = 10

    # Deterministic input, small shapes.
    key = jax.random.PRNGKey(0)
    x = jax.random.normal(key, (2, 4, 16, D), dtype=jnp.float32)

    # Reference: x[..., ~indices]
    keep = jnp.asarray(np.where(~indices)[0])
    ref = jnp.take(x, keep, axis=-1)

    # Default tiling (single block at this small size).
    out = jax.block_until_ready(mask_indices_forward(x, indices))
    assert out.shape == ref.shape, (out.shape, ref.shape)
    assert np.array_equal(np.asarray(out), np.asarray(ref))

    # Force a multi-step grid to exercise the pipelined path (M=128, tm=64 -> 2 steps).
    out_tiled = jax.block_until_ready(mask_indices_forward(x, indices, tm=64))
    assert np.array_equal(np.asarray(out_tiled), np.asarray(ref))

    print("KERNEL_OK")
</pallas_src>

<mosaic_0001>
module attributes {stable_mosaic.version = 11 : i64} {
  func.func @kernel(%arg0: i32, %arg1: memref<128x16xf32, #tpu.memory_space<vmem>>, %arg2: memref<128x10xf32, #tpu.memory_space<vmem>>) attributes {dimension_semantics = [#tpu.dimension_semantics<parallel>], iteration_bounds = array<i64: 1>, scalar_prefetch = 0 : i64, scratch_operands = 0 : i64, tpu.core_type = #tpu.core_type<tc>, window_params = [{transform_indices = @transform_0, window_bounds = array<i64: 128, 16>}, {transform_indices = @transform_1, window_bounds = array<i64: 128, 10>}]} {
    %c0 = arith.constant 0 : index
    %c0_0 = arith.constant 0 : index
    %0 = vector.load %arg1[%c0, %c0_0] : memref<128x16xf32, #tpu.memory_space<vmem>>, vector<128x16xf32>
    %1 = vector.extract_strided_slice %0 {offsets = [0, 1], sizes = [128, 2], strides = [1, 1]} : vector<128x16xf32> to vector<128x2xf32>
    %c0_1 = arith.constant 0 : index
    %c0_2 = arith.constant 0 : index
    %2 = vector.load %arg2[%c0_1, %c0_2] : memref<128x10xf32, #tpu.memory_space<vmem>>, vector<128x2xf32>
    tpu.vector_store %arg2[%c0_1, %c0_2], %1 {strides = array<i32>} : memref<128x10xf32, #tpu.memory_space<vmem>>, vector<128x2xf32>,
    %3 = vector.extract_strided_slice %0 {offsets = [0, 4], sizes = [128, 2], strides = [1, 1]} : vector<128x16xf32> to vector<128x2xf32>
    %c0_3 = arith.constant 0 : index
    %c2 = arith.constant 2 : index
    %4 = vector.load %arg2[%c0_3, %c2] : memref<128x10xf32, #tpu.memory_space<vmem>>, vector<128x2xf32>
    tpu.vector_store %arg2[%c0_3, %c2], %3 {strides = array<i32>} : memref<128x10xf32, #tpu.memory_space<vmem>>, vector<128x2xf32>,
    %5 = vector.extract_strided_slice %0 {offsets = [0, 7], sizes = [128, 2], strides = [1, 1]} : vector<128x16xf32> to vector<128x2xf32>
    %c0_4 = arith.constant 0 : index
    %c4 = arith.constant 4 : index
    %6 = vector.load %arg2[%c0_4, %c4] : memref<128x10xf32, #tpu.memory_space<vmem>>, vector<128x2xf32>
    tpu.vector_store %arg2[%c0_4, %c4], %5 {strides = array<i32>} : memref<128x10xf32, #tpu.memory_space<vmem>>, vector<128x2xf32>,
    %7 = vector.extract_strided_slice %0 {offsets = [0, 10], sizes = [128, 2], strides = [1, 1]} : vector<128x16xf32> to vector<128x2xf32>
    %c0_5 = arith.constant 0 : index
    %c6 = arith.constant 6 : index
    %8 = vector.load %arg2[%c0_5, %c6] : memref<128x10xf32, #tpu.memory_space<vmem>>, vector<128x2xf32>
    tpu.vector_store %arg2[%c0_5, %c6], %7 {strides = array<i32>} : memref<128x10xf32, #tpu.memory_space<vmem>>, vector<128x2xf32>,
    %9 = vector.extract_strided_slice %0 {offsets = [0, 13], sizes = [128, 2], strides = [1, 1]} : vector<128x16xf32> to vector<128x2xf32>
    %c0_6 = arith.constant 0 : index
    %c8 = arith.constant 8 : index
    %10 = vector.load %arg2[%c0_6, %c8] : memref<128x10xf32, #tpu.memory_space<vmem>>, vector<128x2xf32>
    tpu.vector_store %arg2[%c0_6, %c8], %9 {strides = array<i32>} : memref<128x10xf32, #tpu.memory_space<vmem>>, vector<128x2xf32>,
    return
  }
  func.func @transform_0(%arg0: i32) -> (i32, i32) {
    %c0_i32 = arith.constant 0 : i32
    %c0_i32_0 = arith.constant 0 : i32
    return %arg0, %c0_i32 : i32, i32
  }
  func.func @transform_1(%arg0: i32) -> (i32, i32) {
    %c0_i32 = arith.constant 0 : i32
    %c0_i32_0 = arith.constant 0 : i32
    return %arg0, %c0_i32 : i32, i32
  }
}

</mosaic_0001>

<llo_original>
// kernel: tpu_custom_call.1
$region0: #{tpu_custom_call.1}
  #allocation0 [shape = 'u32[]', space=smem, size = 0x4, offset = 0x4, fixed_abs, tag = 'smem constant byte address 0x4 - core index']
  #allocation1 [shape = 'u32[72,128]{1,0:T(1,128)}', space=vmem, size = 0x9000, scoped, tag = 'internal scratch']
  %s0 = inlined_call_operand.vmem [shape: f32[128,16], index: 0, kind: input, shape index: {}]
  %s1 = inlined_call_operand.vmem [shape: f32[128,10], index: 1, kind: output, shape index: {}]
  %s2 = sld [smem:[#allocation0]]
  $region14: #{tpu_custom_call.1} parent=0
    _
  %s4 = ssub.s32 1, %s2
  %s5 = scalar_select 0, %s4, %s2
  // Predicated region
  $region2: #{tpu_custom_call.1} parent=0 // pred_check
    _
  $region3: #{tpu_custom_call.1} parent=0 // pred_check_branch
    %7 = sbr.rel (0) target = $region5
  $region4: #{tpu_custom_call.1} parent=0 // pred_region
    _
  $region5: #{tpu_custom_call.1} parent=0 // pred_fallthru
    _
  %v8 = vld [vmem:[%s0] sm:$0xff]
  %v9 = vld [vmem:[%s0 + $0x8] sm:$0xff]
  %v10 = vld [vmem:[%s0 + $0x10] sm:$0xff]
  %v11 = vld [vmem:[%s0 + $0x18] sm:$0xff]
  %v12 = vld [vmem:[%s0 + $0x20] sm:$0xff]
  %v13 = vld [vmem:[%s0 + $0x28] sm:$0xff]
  %v14 = vld [vmem:[%s0 + $0x30] sm:$0xff]
  %v15 = vld [vmem:[%s0 + $0x38] sm:$0xff]
  %v16 = vld [vmem:[%s0 + $0x40] sm:$0xff]
  %v17 = vld [vmem:[%s0 + $0x48] sm:$0xff]
  %v18 = vld [vmem:[%s0 + $0x50] sm:$0xff]
  %v19 = vld [vmem:[%s0 + $0x58] sm:$0xff]
  %v20 = vld [vmem:[%s0 + $0x60] sm:$0xff]
  %v21 = vld [vmem:[%s0 + $0x68] sm:$0xff]
  %v22 = vld [vmem:[%s0 + $0x70] sm:$0xff]
  %v23 = vld [vmem:[%s0 + $0x78] sm:$0xff]
  %40 = vrot.lane.b32.xlu0 %v8, 127
  %v41 = vpop.permute.xlu0 %40
  %42 = vrot.lane.b32.xlu0 %v9, 127
  %v43 = vpop.permute.xlu0 %42
  %44 = vrot.lane.b32.xlu0 %v10, 127
  %v45 = vpop.permute.xlu0 %44
  %46 = vrot.lane.b32.xlu0 %v11, 127
  %v47 = vpop.permute.xlu0 %46
  %48 = vrot.lane.b32.xlu0 %v12, 127
  %v49 = vpop.permute.xlu0 %48
  %50 = vrot.lane.b32.xlu0 %v13, 127
  %v51 = vpop.permute.xlu0 %50
  %52 = vrot.lane.b32.xlu0 %v14, 127
  %v53 = vpop.permute.xlu0 %52
  %54 = vrot.lane.b32.xlu0 %v15, 127
  %v55 = vpop.permute.xlu0 %54
  %56 = vrot.lane.b32.xlu0 %v16, 127
  %v57 = vpop.permute.xlu0 %56
  %58 = vrot.lane.b32.xlu0 %v17, 127
  %v59 = vpop.permute.xlu0 %58
  %60 = vrot.lane.b32.xlu0 %v18, 127
  %v61 = vpop.permute.xlu0 %60
  %62 = vrot.lane.b32.xlu0 %v19, 127
  %v63 = vpop.permute.xlu0 %62
  %64 = vrot.lane.b32.xlu0 %v20, 127
  %v65 = vpop.permute.xlu0 %64
  %66 = vrot.lane.b32.xlu0 %v21, 127
  %v67 = vpop.permute.xlu0 %66
  %68 = vrot.lane.b32.xlu0 %v22, 127
  %v69 = vpop.permute.xlu0 %68
  %70 = vrot.lane.b32.xlu0 %v23, 127
  %v71 = vpop.permute.xlu0 %70
  %vm88 = vcmask 15360
  %89 = vst.msk [vmem:[%s1] sm:$0xff] %vm88, %v41
  %90 = vst.msk [vmem:[%s1 + $0x8] sm:$0xff] %vm88, %v43
  %91 = vst.msk [vmem:[%s1 + $0x10] sm:$0xff] %vm88, %v45
  %92 = vst.msk [vmem:[%s1 + $0x18] sm:$0xff] %vm88, %v47
  %93 = vst.msk [vmem:[%s1 + $0x20] sm:$0xff] %vm88, %v49
  %94 = vst.msk [vmem:[%s1 + $0x28] sm:$0xff] %vm88, %v51
  %95 = vst.msk [vmem:[%s1 + $0x30] sm:$0xff] %vm88, %v53
  %96 = vst.msk [vmem:[%s1 + $0x38] sm:$0xff] %vm88, %v55
  %97 = vst.msk [vmem:[%s1 + $0x40] sm:$0xff] %vm88, %v57
  %98 = vst.msk [vmem:[%s1 + $0x48] sm:$0xff] %vm88, %v59
  %99 = vst.msk [vmem:[%s1 + $0x50] sm:$0xff] %vm88, %v61
  %100 = vst.msk [vmem:[%s1 + $0x58] sm:$0xff] %vm88, %v63
  %101 = vst.msk [vmem:[%s1 + $0x60] sm:$0xff] %vm88, %v65
  %102 = vst.msk [vmem:[%s1 + $0x68] sm:$0xff] %vm88, %v67
  %103 = vst.msk [vmem:[%s1 + $0x70] sm:$0xff] %vm88, %v69
  %104 = vst.msk [vmem:[%s1 + $0x78] sm:$0xff] %vm88, %v71
  %105 = vrot.lane.b32.xlu0 %v8, 126
  %v106 = vpop.permute.xlu0 %105
  %107 = vrot.lane.b32.xlu0 %v9, 126
  %v108 = vpop.permute.xlu0 %107
  %109 = vrot.lane.b32.xlu0 %v10, 126
  %v110 = vpop.permute.xlu0 %109
  %111 = vrot.lane.b32.xlu0 %v11, 126
  %v112 = vpop.permute.xlu0 %111
  %113 = vrot.lane.b32.xlu0 %v12, 126
  %v114 = vpop.permute.xlu0 %113
  %115 = vrot.lane.b32.xlu0 %v13, 126
  %v116 = vpop.permute.xlu0 %115
  %117 = vrot.lane.b32.xlu0 %v14, 126
  %v118 = vpop.permute.xlu0 %117
  %119 = vrot.lane.b32.xlu0 %v15, 126
  %v120 = vpop.permute.xlu0 %119
  %121 = vrot.lane.b32.xlu0 %v16, 126
  %v122 = vpop.permute.xlu0 %121
  %123 = vrot.lane.b32.xlu0 %v17, 126
  %v124 = vpop.permute.xlu0 %123
  %125 = vrot.lane.b32.xlu0 %v18, 126
  %v126 = vpop.permute.xlu0 %125
  %127 = vrot.lane.b32.xlu0 %v19, 126
  %v128 = vpop.permute.xlu0 %127
  %129 = vrot.lane.b32.xlu0 %v20, 126
  %v130 = vpop.permute.xlu0 %129
  %131 = vrot.lane.b32.xlu0 %v21, 126
  %v132 = vpop.permute.xlu0 %131
  %133 = vrot.lane.b32.xlu0 %v22, 126
  %v134 = vpop.permute.xlu0 %133
  %135 = vrot.lane.b32.xlu0 %v23, 126
  %v136 = vpop.permute.xlu0 %135
  %vm153 = vcmask 31760
  %154 = vst.msk [vmem:[%s1] sm:$0xff] %vm153, %v106
  %155 = vst.msk [vmem:[%s1 + $0x8] sm:$0xff] %vm153, %v108
  %156 = vst.msk [vmem:[%s1 + $0x10] sm:$0xff] %vm153, %v110
  %157 = vst.msk [vmem:[%s1 + $0x18] sm:$0xff] %vm153, %v112
  %158 = vst.msk [vmem:[%s1 + $0x20] sm:$0xff] %vm153, %v114
  %159 = vst.msk [vmem:[%s1 + $0x28] sm:$0xff] %vm153, %v116
  %160 = vst.msk [vmem:[%s1 + $0x30] sm:$0xff] %vm153, %v118
  %161 = vst.msk [vmem:[%s1 + $0x38] sm:$0xff] %vm153, %v120
  %162 = vst.msk [vmem:[%s1 + $0x40] sm:$0xff] %vm153, %v122
  %163 = vst.msk [vmem:[%s1 + $0x48] sm:$0xff] %vm153, %v124
  %164 = vst.msk [vmem:[%s1 + $0x50] sm:$0xff] %vm153, %v126
  %165 = vst.msk [vmem:[%s1 + $0x58] sm:$0xff] %vm153, %v128
  %166 = vst.msk [vmem:[%s1 + $0x60] sm:$0xff] %vm153, %v130
  %167 = vst.msk [vmem:[%s1 + $0x68] sm:$0xff] %vm153, %v132
  %168 = vst.msk [vmem:[%s1 + $0x70] sm:$0xff] %vm153, %v134
  %169 = vst.msk [vmem:[%s1 + $0x78] sm:$0xff] %vm153, %v136
  %170 = vrot.lane.b32.xlu0 %v8, 125
  %v171 = vpop.permute.xlu0 %170
  %172 = vrot.lane.b32.xlu0 %v9, 125
  %v173 = vpop.permute.xlu0 %172
  %174 = vrot.lane.b32.xlu0 %v10, 125
  %v175 = vpop.permute.xlu0 %174
  %176 = vrot.lane.b32.xlu0 %v11, 125
  %v177 = vpop.permute.xlu0 %176
  %178 = vrot.lane.b32.xlu0 %v12, 125
  %v179 = vpop.permute.xlu0 %178
  %180 = vrot.lane.b32.xlu0 %v13, 125
  %v181 = vpop.permute.xlu0 %180
  %182 = vrot.lane.b32.xlu0 %v14, 125
  %v183 = vpop.permute.xlu0 %182
  %184 = vrot.lane.b32.xlu0 %v15, 125
  %v185 = vpop.permute.xlu0 %184
  %186 = vrot.lane.b32.xlu0 %v16, 125
  %v187 = vpop.permute.xlu0 %186
  %188 = vrot.lane.b32.xlu0 %v17, 125
  %v189 = vpop.permute.xlu0 %188
  %190 = vrot.lane.b32.xlu0 %v18, 125
  %v191 = vpop.permute.xlu0 %190
  %192 = vrot.lane.b32.xlu0 %v19, 125
  %v193 = vpop.permute.xlu0 %192
  %194 = vrot.lane.b32.xlu0 %v20, 125
  %v195 = vpop.permute.xlu0 %194
  %196 = vrot.lane.b32.xlu0 %v21, 125
  %v197 = vpop.permute.xlu0 %196
  %198 = vrot.lane.b32.xlu0 %v22, 125
  %v199 = vpop.permute.xlu0 %198
  %200 = vrot.lane.b32.xlu0 %v23, 125
  %v201 = vpop.permute.xlu0 %200
  %vm218 = vcmask 48160
  %219 = vst.msk [vmem:[%s1] sm:$0xff] %vm218, %v171
  %220 = vst.msk [vmem:[%s1 + $0x8] sm:$0xff] %vm218, %v173
  %221 = vst.msk [vmem:[%s1 + $0x10] sm:$0xff] %vm218, %v175
  %222 = vst.msk [vmem:[%s1 + $0x18] sm:$0xff] %vm218, %v177
  %223 = vst.msk [vmem:[%s1 + $0x20] sm:$0xff] %vm218, %v179
  %224 = vst.msk [vmem:[%s1 + $0x28] sm:$0xff] %vm218, %v181
  %225 = vst.msk [vmem:[%s1 + $0x30] sm:$0xff] %vm218, %v183
  %226 = vst.msk [vmem:[%s1 + $0x38] sm:$0xff] %vm218, %v185
  %227 = vst.msk [vmem:[%s1 + $0x40] sm:$0xff] %vm218, %v187
  %228 = vst.msk [vmem:[%s1 + $0x48] sm:$0xff] %vm218, %v189
  %229 = vst.msk [vmem:[%s1 + $0x50] sm:$0xff] %vm218, %v191
  %230 = vst.msk [vmem:[%s1 + $0x58] sm:$0xff] %vm218, %v193
  %231 = vst.msk [vmem:[%s1 + $0x60] sm:$0xff] %vm218, %v195
  %232 = vst.msk [vmem:[%s1 + $0x68] sm:$0xff] %vm218, %v197
  %233 = vst.msk [vmem:[%s1 + $0x70] sm:$0xff] %vm218, %v199
  %234 = vst.msk [vmem:[%s1 + $0x78] sm:$0xff] %vm218, %v201
  %235 = vrot.lane.b32.xlu0 %v8, 124
  %v236 = vpop.permute.xlu0 %235
  %237 = vrot.lane.b32.xlu0 %v9, 124
  %v238 = vpop.permute.xlu0 %237
  %239 = vrot.lane.b32.xlu0 %v10, 124
  %v240 = vpop.permute.xlu0 %239
  %241 = vrot.lane.b32.xlu0 %v11, 124
  %v242 = vpop.permute.xlu0 %241
  %243 = vrot.lane.b32.xlu0 %v12, 124
  %v244 = vpop.permute.xlu0 %243
  %245 = vrot.lane.b32.xlu0 %v13, 124
  %v246 = vpop.permute.xlu0 %245
  %247 = vrot.lane.b32.xlu0 %v14, 124
  %v248 = vpop.permute.xlu0 %247
  %249 = vrot.lane.b32.xlu0 %v15, 124
  %v250 = vpop.permute.xlu0 %249
  %251 = vrot.lane.b32.xlu0 %v16, 124
  %v252 = vpop.permute.xlu0 %251
  %253 = vrot.lane.b32.xlu0 %v17, 124
  %v254 = vpop.permute.xlu0 %253
  %255 = vrot.lane.b32.xlu0 %v18, 124
  %v256 = vpop.permute.xlu0 %255
  %257 = vrot.lane.b32.xlu0 %v19, 124
  %v258 = vpop.permute.xlu0 %257
  %259 = vrot.lane.b32.xlu0 %v20, 124
  %v260 = vpop.permute.xlu0 %259
  %261 = vrot.lane.b32.xlu0 %v21, 124
  %v262 = vpop.permute.xlu0 %261
  %263 = vrot.lane.b32.xlu0 %v22, 124
  %v264 = vpop.permute.xlu0 %263
  %265 = vrot.lane.b32.xlu0 %v23, 124
  %v266 = vpop.permute.xlu0 %265
  %vm283 = vcmask 64560
  %284 = vst.msk [vmem:[%s1] sm:$0xff] %vm283, %v236
  %285 = vst.msk [vmem:[%s1 + $0x8] sm:$0xff] %vm283, %v238
  %286 = vst.msk [vmem:[%s1 + $0x10] sm:$0xff] %vm283, %v240
  %287 = vst.msk [vmem:[%s1 + $0x18] sm:$0xff] %vm283, %v242
  %288 = vst.msk [vmem:[%s1 + $0x20] sm:$0xff] %vm283, %v244
  %289 = vst.msk [vmem:[%s1 + $0x28] sm:$0xff] %vm283, %v246
  %290 = vst.msk [vmem:[%s1 + $0x30] sm:$0xff] %vm283, %v248
  %291 = vst.msk [vmem:[%s1 + $0x38] sm:$0xff] %vm283, %v250
  %292 = vst.msk [vmem:[%s1 + $0x40] sm:$0xff] %vm283, %v252
  %293 = vst.msk [vmem:[%s1 + $0x48] sm:$0xff] %vm283, %v254
  %294 = vst.msk [vmem:[%s1 + $0x50] sm:$0xff] %vm283, %v256
  %295 = vst.msk [vmem:[%s1 + $0x58] sm:$0xff] %vm283, %v258
  %296 = vst.msk [vmem:[%s1 + $0x60] sm:$0xff] %vm283, %v260
  %297 = vst.msk [vmem:[%s1 + $0x68] sm:$0xff] %vm283, %v262
  %298 = vst.msk [vmem:[%s1 + $0x70] sm:$0xff] %vm283, %v264
  %299 = vst.msk [vmem:[%s1 + $0x78] sm:$0xff] %vm283, %v266
  %300 = vrot.lane.b32.xlu0 %v8, 123
  %v301 = vpop.permute.xlu0 %300
  %302 = vrot.lane.b32.xlu0 %v9, 123
  %v303 = vpop.permute.xlu0 %302
  %304 = vrot.lane.b32.xlu0 %v10, 123
  %v305 = vpop.permute.xlu0 %304
  %306 = vrot.lane.b32.xlu0 %v11, 123
  %v307 = vpop.permute.xlu0 %306
  %308 = vrot.lane.b32.xlu0 %v12, 123
  %v309 = vpop.permute.xlu0 %308
  %310 = vrot.lane.b32.xlu0 %v13, 123
  %v311 = vpop.permute.xlu0 %310
  %312 = vrot.lane.b32.xlu0 %v14, 123
  %v313 = vpop.permute.xlu0 %312
  %314 = vrot.lane.b32.xlu0 %v15, 123
  %v315 = vpop.permute.xlu0 %314
  %316 = vrot.lane.b32.xlu0 %v16, 123
  %v317 = vpop.permute.xlu0 %316
  %318 = vrot.lane.b32.xlu0 %v17, 123
  %v319 = vpop.permute.xlu0 %318
  %320 = vrot.lane.b32.xlu0 %v18, 123
  %v321 = vpop.permute.xlu0 %320
  %322 = vrot.lane.b32.xlu0 %v19, 123
  %v323 = vpop.permute.xlu0 %322
  %324 = vrot.lane.b32.xlu0 %v20, 123
  %v325 = vpop.permute.xlu0 %324
  %326 = vrot.lane.b32.xlu0 %v21, 123
  %v327 = vpop.permute.xlu0 %326
  %328 = vrot.lane.b32.xlu0 %v22, 123
  %v329 = vpop.permute.xlu0 %328
  %330 = vrot.lane.b32.xlu0 %v23, 123
  %v331 = vpop.permute.xlu0 %330
  %vm348 = vcmask 80960
  %349 = vst.msk [vmem:[%s1] sm:$0xff] %vm348, %v301
  %350 = vst.msk [vmem:[%s1 + $0x8] sm:$0xff] %vm348, %v303
  %351 = vst.msk [vmem:[%s1 + $0x10] sm:$0xff] %vm348, %v305
  %352 = vst.msk [vmem:[%s1 + $0x18] sm:$0xff] %vm348, %v307
  %353 = vst.msk [vmem:[%s1 + $0x20] sm:$0xff] %vm348, %v309
  %354 = vst.msk [vmem:[%s1 + $0x28] sm:$0xff] %vm348, %v311
  %355 = vst.msk [vmem:[%s1 + $0x30] sm:$0xff] %vm348, %v313
  %356 = vst.msk [vmem:[%s1 + $0x38] sm:$0xff] %vm348, %v315
  %357 = vst.msk [vmem:[%s1 + $0x40] sm:$0xff] %vm348, %v317
  %358 = vst.msk [vmem:[%s1 + $0x48] sm:$0xff] %vm348, %v319
  %359 = vst.msk [vmem:[%s1 + $0x50] sm:$0xff] %vm348, %v321
  %360 = vst.msk [vmem:[%s1 + $0x58] sm:$0xff] %vm348, %v323
  %361 = vst.msk [vmem:[%s1 + $0x60] sm:$0xff] %vm348, %v325
  %362 = vst.msk [vmem:[%s1 + $0x68] sm:$0xff] %vm348, %v327
  %363 = vst.msk [vmem:[%s1 + $0x70] sm:$0xff] %vm348, %v329
  %364 = vst.msk [vmem:[%s1 + $0x78] sm:$0xff] %vm348, %v331
  // Predicated region
  $region6: #{tpu_custom_call.1} parent=0 // pred_check
    _
  $region7: #{tpu_custom_call.1} parent=0 // pred_check_branch
    %366 = sbr.rel (0) target = $region9
  $region8: #{tpu_custom_call.1} parent=0 // pred_region
    _
  $region9: #{tpu_custom_call.1} parent=0 // pred_fallthru
    _
  // Predicated region
  $region10: #{tpu_custom_call.1} parent=0 // pred_check
    _
  $region11: #{tpu_custom_call.1} parent=0 // pred_check_branch
    %368 = sbr.rel (0) target = $region13
  $region12: #{tpu_custom_call.1} parent=0 // pred_region
    _
  $region13: #{tpu_custom_call.1} parent=0 // pred_fallthru
    _

</llo_original>
